<compile_context>
chip_gen: v5e
topology: v5e:2x2
jax: 0.10.0
libtpu: 0.0.40
codegen_flags: <defaults>
</compile_context>

<pallas_src>
import functools
import math

import jax
import jax.numpy as jnp
from jax.experimental import pallas as pl
from jax.experimental.pallas import tpu as pltpu

EPS = 1e-5
LANE = 128                       # lane width; channels padded to multiples of this
TM_CAP = 512                     # max row tile of the (im2col) matmul
TILE_BUDGET = 12 * 1024 * 1024   # target double-buffered VMEM bytes per call


def _round_up(x, m):
    return ((x + m - 1) // m) * m


# ----------------------------- Pallas kernels -----------------------------

def _mm_bias_kernel(x_ref, w_ref, b_ref, o_ref, *, relu):
    # bf16 x bf16 -> f32 accumulate on the MXU; f32 epilogue (bias, ReLU);
    # bf16 store (halves inter-layer HBM traffic).
    y = jnp.dot(x_ref[...], w_ref[...], preferred_element_type=jnp.float32)
    y = y + b_ref[...]
    if relu:
        y = jnp.maximum(y, 0.0)
    o_ref[...] = y.astype(o_ref.dtype)


def _mm_bias_res_kernel(x_ref, w_ref, b_ref, r_ref, o_ref, *, relu):
    # Residual variant (identity blocks): residual arrives bf16, added in f32.
    y = jnp.dot(x_ref[...], w_ref[...], preferred_element_type=jnp.float32)
    y = y + b_ref[...] + r_ref[...].astype(jnp.float32)
    if relu:
        y = jnp.maximum(y, 0.0)
    o_ref[...] = y.astype(o_ref.dtype)


# ----------------------------- tile selection -----------------------------

def _tile_bytes(tm, tn, Kp, has_res):
    b = tm * Kp * 2 + Kp * tn * 2 + tn * 4 + tm * tn * 2   # x, w, bias, out
    if has_res:
        b += tm * tn * 2
    return 2 * b                                            # double-buffered


def _choose_tiles(M, Kp, Cout, has_res):
    tm = min(TM_CAP, _round_up(max(M, 1), 16))
    tn = Cout
    # Shrink until the double-buffered footprint fits the budget (no-op at the
    # test shapes; matters at real CLIP resolutions / on v7x's 64 MiB VMEM).
    while _tile_bytes(tm, tn, Kp, has_res) > TILE_BUDGET:
        if tn > LANE and tn % (2 * LANE) == 0:
            tn //= 2
        elif tm > 16:
            tm = max(16, tm // 2)
        else:
            break
    # v7x: expose >= 2 grid steps on a "parallel" axis so the second
    # TensorCore is not idle.  Prefer splitting M (no redundant x DMA), else
    # split Cout (the x tile is tiny for the deep layers).  Costs at most one
    # extra ~0.35us grid step on v5e/v6e (single TensorCore).
    if pl.cdiv(M, tm) * (Cout // tn) == 1:
        half_tm = _round_up((M + 1) // 2, 16)
        if pl.cdiv(M, half_tm) >= 2:
            tm = half_tm
        elif Cout >= 2 * LANE and (Cout // 2) % LANE == 0:
            tn = Cout // 2
    return tm, tn


# ----------------------------- kernel wrapper -----------------------------

def matmul_bias(x2d, w2d, bias, relu=True, residual=None):
    """x2d: [M, K] (bf16), w2d: [K, Cout] f32 (BN scale pre-folded,
    Cout % 128 == 0), bias: [Cout] f32, residual: optional [M, Cout] bf16.
    Returns [M, Cout] bf16."""
    M, K = x2d.shape
    Cout = w2d.shape[1]
    assert Cout % LANE == 0, Cout

    # K only needs bf16 sublane alignment (16); each block spans the full K so
    # the (8,128) BlockSpec rule is met by "equals the array dim".  This keeps
    # the stem conv1 contraction at 32 instead of 128.
    Kp = _round_up(K, 16)
    has_res = residual is not None
    tm, tn = _choose_tiles(M, Kp, Cout, has_res)
    Mp = _round_up(M, tm)
    assert Cout % tn == 0, (Cout, tn)   # guard against silent tail-channel drop

    xp = x2d.astype(jnp.bfloat16)
    wb = w2d.astype(jnp.bfloat16)
    if Kp != K:
        xp = jnp.pad(xp, ((0, 0), (0, Kp - K)))
        wb = jnp.pad(wb, ((0, Kp - K), (0, 0)))
    if Mp != M:
        xp = jnp.pad(xp, ((0, Mp - M), (0, 0)))
    b = bias.reshape(1, Cout).astype(jnp.float32)

    in_specs = [
        pl.BlockSpec((tm, Kp), lambda i, j: (i, 0)),
        pl.BlockSpec((Kp, tn), lambda i, j: (0, j)),
        pl.BlockSpec((1, tn), lambda i, j: (0, j)),
    ]
    args = [xp, wb, b]
    if has_res:
        rp = residual.astype(jnp.bfloat16)   # already bf16: no-op, no HBM pass
        if Mp != M:
            rp = jnp.pad(rp, ((0, Mp - M), (0, 0)))
        in_specs.append(pl.BlockSpec((tm, tn), lambda i, j: (i, j)))
        args.append(rp)
        kernel = functools.partial(_mm_bias_res_kernel, relu=relu)
    else:
        kernel = functools.partial(_mm_bias_kernel, relu=relu)

    # VMEM limit derived from the actual tile footprint (+ slack), clamped to
    # [32 MiB default, 64 MiB = v7x physical].
    vmem_limit = int(min(max(2 * _tile_bytes(tm, tn, Kp, has_res) + (8 << 20),
                             32 << 20), 64 << 20))

    out = pl.pallas_call(
        kernel,
        out_shape=jax.ShapeDtypeStruct((Mp, Cout), jnp.bfloat16),
        grid=(Mp // tm, Cout // tn),
        in_specs=in_specs,
        out_specs=pl.BlockSpec((tm, tn), lambda i, j: (i, j)),
        compiler_params=pltpu.CompilerParams(
            dimension_semantics=("parallel", "parallel"),
            vmem_limit_bytes=vmem_limit),
    )(*args)
    if Mp != M:
        out = out[:M]
    return out


# ----------------------------- conv plumbing -----------------------------

def im2col(x, kh, kw, stride, padding, dilation):
    """x: [N, H, W, C] bf16 -> ([N*Ho*Wo, kh*kw*C], (N, Ho, Wo))."""
    N, H, W, C = x.shape
    Ho = (H + 2 * padding - dilation * (kh - 1) - 1) // stride + 1
    Wo = (W + 2 * padding - dilation * (kw - 1) - 1) // stride + 1
    if padding:
        x = jnp.pad(x, ((0, 0), (padding, padding), (padding, padding), (0, 0)))
    cols = []
    for i in range(kh):
        for j in range(kw):
            sl = x[:,
                   i * dilation: i * dilation + (Ho - 1) * stride + 1: stride,
                   j * dilation: j * dilation + (Wo - 1) * stride + 1: stride,
                   :]
            cols.append(sl)
    patches = cols[0] if len(cols) == 1 else jnp.concatenate(cols, axis=-1)
    return patches.reshape(N * Ho * Wo, kh * kw * C), (N, Ho, Wo)


def conv_bn(x, w, scale, bias, stride=1, padding=0, dilation=1,
            relu=True, residual=None):
    """x: NHWC bf16 with physical channels >= logical Cin (extra channels are
    exactly zero).  w: [kh, kw, Cin, Cout] f32.  Returns NHWC bf16 with Cout
    padded up to a multiple of 128; the padded output channels are exactly
    zero (zero weight columns, zero bias, ReLU(0)=0), so the padding is
    carried losslessly through the network."""
    kh, kw, cin, cout = w.shape
    cin_p = x.shape[-1]
    cout_p = _round_up(cout, LANE)

    wf = w * scale.reshape(1, 1, 1, cout)
    wf = jnp.pad(wf, ((0, 0), (0, 0), (0, cin_p - cin), (0, cout_p - cout)))
    b = jnp.pad(bias, (0, cout_p - cout))

    # TODO(synk): 3x3 convs still materialize the im2col matrix in HBM (9x
    # activation read amplification, though now in bf16).  Fully in-kernel tap
    # accumulation needs strided in-kernel gathers for the stride-2 layers and
    # is left for a follow-up.
    patches, (N, Ho, Wo) = im2col(x.astype(jnp.bfloat16), kh, kw,
                                  stride, padding, dilation)
    w2d = wf.reshape(kh * kw * cin_p, cout_p)

    res2d = None
    if residual is not None:
        rc = residual.shape[-1]
        if rc < cout_p:
            residual = jnp.pad(residual,
                               ((0, 0), (0, 0), (0, 0), (0, cout_p - rc)))
        res2d = residual.reshape(-1, cout_p)

    y = matmul_bias(patches, w2d, b, relu=relu, residual=res2d)
    return y.reshape(N, Ho, Wo, cout_p)


def conv3_downsample_fused(h2, x, p):
    """Fuses conv3+bn3, the 1x1 strided downsample conv+bn, the residual add
    and the final ReLU into a single Pallas matmul:
        y = relu([h2 | x_s] @ [[W3*s3], [Wd*sd]] + (b3 + bd))
    so the 4*planes-wide identity tensor never round-trips through HBM and a
    whole pallas_call is removed per block."""
    stride = p["stride"]
    xs = x[:, ::stride, ::stride, :] if stride > 1 else x
    N, Ho, Wo, cin_x = xs.shape
    assert h2.shape[:3] == xs.shape[:3]
    cin_h = h2.shape[-1]

    w3 = p["conv3"]
    s3, b3 = p["bn3"]
    wd = p["ds_conv"]
    sd, bd = p["ds_bn"]
    cout = w3.shape[-1]
    cout_p = _round_up(cout, LANE)

    w3f = w3.reshape(w3.shape[2], cout) * s3.reshape(1, cout)
    w3f = jnp.pad(w3f, ((0, cin_h - w3.shape[2]), (0, cout_p - cout)))
    wdf = wd.reshape(wd.shape[2], cout) * sd.reshape(1, cout)
    wdf = jnp.pad(wdf, ((0, cin_x - wd.shape[2]), (0, cout_p - cout)))
    w_cat = jnp.concatenate([w3f, wdf], axis=0)          # (cin_h + cin_x, cout_p)
    b = jnp.pad(b3 + bd, (0, cout_p - cout))

    lhs = jnp.concatenate([h2.reshape(N * Ho * Wo, cin_h),
                           xs.reshape(N * Ho * Wo, cin_x)], axis=1)
    y = matmul_bias(lhs, w_cat, b, relu=True)
    return y.reshape(N, Ho, Wo, cout_p)


def avgpool2(x):
    """nn.AvgPool2d(2).  Plain-JAX reshape-mean: purely mem-bound at these
    sizes, a separate Pallas launch would be pure overhead.
    TODO(synk): fold the pool into the stem conv3 epilogue (or layer1 conv1
    read) once a bottleneck-level fused kernel exists."""
    N, H, W, C = x.shape
    Ho, Wo = H // 2, W // 2
    x = x[:, :Ho * 2, :Wo * 2, :].astype(jnp.float32)
    return x.reshape(N, Ho, 2, Wo, 2, C).mean(axis=(2, 4)).astype(jnp.bfloat16)


# ----------------------------- parameter init -----------------------------

def conv_param(key, kh, kw, cin, cout):
    # matches m.weight.data.normal_(0, sqrt(2 / (kh*kw*cout)))
    std = math.sqrt(2.0 / (kh * kw * cout))
    return jax.random.normal(key, (kh, kw, cin, cout), jnp.float32) * std


def bn_param(c):
    # eval-mode BN, gamma=1, beta=0, running stats (0, 1), folded.
    scale = jnp.full((c,), 1.0 / math.sqrt(1.0 + EPS), jnp.float32)
    bias = jnp.zeros((c,), jnp.float32)
    return scale, bias


EXPANSION = 4  # Bottleneck


def make_bottleneck_params(key, inplanes, planes, stride, dilation, downsample):
    k = jax.random.split(key, 4)
    p = {
        "conv1": conv_param(k[0], 1, 1, inplanes, planes), "bn1": bn_param(planes),
        "conv2": conv_param(k[1], 3, 3, planes, planes), "bn2": bn_param(planes),
        "conv3": conv_param(k[2], 1, 1, planes, planes * EXPANSION),
        "bn3": bn_param(planes * EXPANSION),
        "stride": stride, "dilation": dilation,
    }
    if downsample:
        p["ds_conv"] = conv_param(k[3], 1, 1, inplanes, planes * EXPANSION)
        p["ds_bn"] = bn_param(planes * EXPANSION)
    return p


def make_layer_params(key, inplanes, planes, blocks, stride, dilation):
    keys = jax.random.split(key, blocks)
    downsample = (stride != 1) or (inplanes != planes * EXPANSION)
    params = [make_bottleneck_params(keys[0], inplanes, planes, stride,
                                     max(dilation // 2, 1), downsample)]
    inplanes = planes * EXPANSION
    for i in range(1, blocks):
        params.append(make_bottleneck_params(keys[i], inplanes, planes, 1,
                                             dilation, False))
    return params, inplanes


def init_resnet_clip_params(key, layers=(1, 1, 1), output_stride=16):
    if output_stride == 16:
        strides, dilations = [1, 2, 2, 1], [1, 1, 1, 2]
    elif output_stride == 8:
        strides, dilations = [1, 2, 1, 1], [1, 1, 2, 4]
    else:
        raise NotImplementedError
    width = 64
    keys = jax.random.split(key, 6)
    p = {
        "conv1": conv_param(keys[0], 3, 3, 3, width // 2), "bn1": bn_param(width // 2),
        "conv2": conv_param(keys[1], 3, 3, width // 2, width // 2), "bn2": bn_param(width // 2),
        "conv3": conv_param(keys[2], 3, 3, width // 2, width), "bn3": bn_param(width),
    }
    inplanes = width
    p["layer1"], inplanes = make_layer_params(keys[3], inplanes, 64, layers[0], strides[0], dilations[0])
    p["layer2"], inplanes = make_layer_params(keys[4], inplanes, 128, layers[1], strides[1], dilations[1])
    p["layer3"], inplanes = make_layer_params(keys[5], inplanes, 256, layers[2], strides[2], dilations[2])
    return p


# ----------------------------- forward pass -----------------------------

def bottleneck_forward(x, p):
    stride, dilation = p["stride"], p["dilation"]
    out = conv_bn(x, p["conv1"], *p["bn1"], stride=1, padding=0, relu=True)
    out = conv_bn(out, p["conv2"], *p["bn2"], stride=stride, padding=dilation,
                  dilation=dilation, relu=True)
    if "ds_conv" in p:
        # conv3+bn3 + downsample + residual + ReLU in ONE pallas_call.
        out = conv3_downsample_fused(out, x, p)
    else:
        # Identity block: conv3+bn3 + residual add + ReLU fused; the residual
        # is the bf16 block input, added in f32 inside the kernel.
        out = conv_bn(out, p["conv3"], *p["bn3"], stride=1, padding=0,
                      relu=True, residual=x)
    return out


def resnet_clip_forward(params, x_nchw):
    # layout: input NCHW (PyTorch), internal NHWC bf16, outputs NCHW f32.
    x = jnp.transpose(x_nchw, (0, 2, 3, 1)).astype(jnp.bfloat16)
    # stem
    x = conv_bn(x, params["conv1"], *params["bn1"], stride=2, padding=1, relu=True)
    x = conv_bn(x, params["conv2"], *params["bn2"], stride=1, padding=1, relu=True)
    x = conv_bn(x, params["conv3"], *params["bn3"], stride=1, padding=1, relu=True)
    x = avgpool2(x)
    xs = []
    for name in ("layer1", "layer2", "layer3"):
        blocks = params[name]
        for bp in blocks:
            x = bottleneck_forward(x, bp)
        c_logical = blocks[-1]["conv3"].shape[-1]  # slice off padded channels
        xs.append(x[..., :c_logical])
    xs.append(xs[-1])  # forward() appends the last stage twice
    return [jnp.transpose(t, (0, 3, 1, 2)).astype(jnp.float32) for t in xs]


# ----------------------------- main -----------------------------

if __name__ == "__main__":
    key = jax.random.PRNGKey(0)
    kp, kx = jax.random.split(key)
    params = init_resnet_clip_params(kp, layers=(1, 1, 1), output_stride=16)
    x = jax.random.normal(kx, (2, 3, 16, 16), jnp.float32)  # NCHW

    outs = resnet_clip_forward(params, x)
    outs = [jax.block_until_ready(o) for o in outs]

    expected = [(2, 256, 4, 4), (2, 512, 2, 2), (2, 1024, 1, 1), (2, 1024, 1, 1)]
    assert [tuple(o.shape) for o in outs] == expected, \
        f"bad shapes: {[o.shape for o in outs]}"
    assert all(bool(jnp.isfinite(o).all()) for o in outs)
    print("KERNEL_OK")
</pallas_src>

<mosaic_0001>
module attributes {stable_mosaic.version = 11 : i64} {
  func.func @_mm_bias_kernel(%arg0: i32, %arg1: i32, %arg2: memref<64x32xbf16, #tpu.memory_space<vmem>>, %arg3: memref<32x128xbf16, #tpu.memory_space<vmem>>, %arg4: memref<1x128xf32, #tpu.memory_space<vmem>>, %arg5: memref<64x128xbf16, #tpu.memory_space<vmem>>) attributes {dimension_semantics = [#tpu.dimension_semantics<parallel>, #tpu.dimension_semantics<parallel>], iteration_bounds = array<i64: 2, 1>, scalar_prefetch = 0 : i64, scratch_operands = 0 : i64, tpu.core_type = #tpu.core_type<tc>, window_params = [{transform_indices = @transform_0, window_bounds = array<i64: 64, 32>}, {transform_indices = @transform_1, window_bounds = array<i64: 32, 128>}, {transform_indices = @transform_2, window_bounds = array<i64: 1, 128>}, {transform_indices = @transform_3, window_bounds = array<i64: 64, 128>}]} {
    %c0 = arith.constant 0 : index
    %c0_0 = arith.constant 0 : index
    %0 = vector.load %arg2[%c0, %c0_0] : memref<64x32xbf16, #tpu.memory_space<vmem>>, vector<64x32xbf16>
    %c0_1 = arith.constant 0 : index
    %c0_2 = arith.constant 0 : index
    %1 = vector.load %arg3[%c0_1, %c0_2] : memref<32x128xbf16, #tpu.memory_space<vmem>>, vector<32x128xbf16>
    %cst = arith.constant dense<0.000000e+00> : vector<64x128xf32>
    %2 = tpu.matmul %0, %1, %cst {dimension_numbers = #tpu.dot_dimension_numbers<[1], [0], [0], [1], [0, 0, 1, 1], [], []>} : vector<64x32xbf16>, vector<32x128xbf16>, vector<64x128xf32> -> vector<64x128xf32>
    %c0_3 = arith.constant 0 : index
    %c0_4 = arith.constant 0 : index
    %3 = vector.load %arg4[%c0_3, %c0_4] : memref<1x128xf32, #tpu.memory_space<vmem>>, vector<1x128xf32>
    %4 = vector.broadcast %3 : vector<1x128xf32> to vector<64x128xf32>
    %5 = arith.addf %2, %4 : vector<64x128xf32>
    %cst_5 = arith.constant 0.000000e+00 : f32
    %6 = vector.broadcast %cst_5 : f32 to vector<64x128xf32>
    %7 = arith.maximumf %5, %6 : vector<64x128xf32>
    %8 = arith.truncf %7 : vector<64x128xf32> to vector<64x128xbf16>
    %c0_6 = arith.constant 0 : index
    %c0_7 = arith.constant 0 : index
    %9 = vector.load %arg5[%c0_6, %c0_7] : memref<64x128xbf16, #tpu.memory_space<vmem>>, vector<64x128xbf16>
    tpu.vector_store %arg5[%c0_6, %c0_7], %8 {strides = array<i32>} : memref<64x128xbf16, #tpu.memory_space<vmem>>, vector<64x128xbf16>,
    return
  }
  func.func @transform_0(%arg0: i32, %arg1: i32) -> (i32, i32) {
    %c0_i32 = arith.constant 0 : i32
    %c0_i32_0 = arith.constant 0 : i32
    return %arg0, %c0_i32 : i32, i32
  }
  func.func @transform_1(%arg0: i32, %arg1: i32) -> (i32, i32) {
    %c0_i32 = arith.constant 0 : i32
    %c0_i32_0 = arith.constant 0 : i32
    return %c0_i32, %arg1 : i32, i32
  }
  func.func @transform_2(%arg0: i32, %arg1: i32) -> (i32, i32) {
    %c0_i32 = arith.constant 0 : i32
    %c0_i32_0 = arith.constant 0 : i32
    return %c0_i32, %arg1 : i32, i32
  }
  func.func @transform_3(%arg0: i32, %arg1: i32) -> (i32, i32) {
    %c0_i32 = arith.constant 0 : i32
    return %arg0, %arg1 : i32, i32
  }
}

</mosaic_0001>

<llo_original>
// kernel: tpu_custom_call.1
$region0: #{tpu_custom_call.1}
  #allocation0 [shape = 'u32[]', space=smem, size = 0x4, offset = 0x4, fixed_abs, tag = 'smem constant byte address 0x4 - core index']
  #allocation1 [shape = 'u32[72,128]{1,0:T(1,128)}', space=vmem, size = 0x9000, scoped, tag = 'internal scratch']
  %s0 = inlined_call_operand.vmem [shape: bf16[128,32], index: 0, kind: input, shape index: {}]
  %s1 = inlined_call_operand.vmem [shape: bf16[32,128], index: 1, kind: input, shape index: {}]
  %s2 = inlined_call_operand.vmem [shape: f32[1,128], index: 2, kind: input, shape index: {}]
  %s3 = inlined_call_operand.hbm [shape: bf16[128,128], index: 3, kind: output, shape index: {}]
  %s4 = sld [smem:[#allocation0]]
  $region45: #{tpu_custom_call.1} parent=0
    _
  %s6 = ssub.s32 1, %s4
  %s7 = scalar_select 0, %s6, %s4
  $region1: #{tpu_custom_call.1} parent=0
    #allocation2 [shape = 'u8[32768]{0}', space=vmem, size = 0x8000, scoped, tag = 'output window, operand 0']
    #allocation3 [shape = 's32[2]{0}', space=sflag, size = 0x8, scoped, tag = 'scoped memory for tpu_custom_call.1']
    %8 = vsyncpa [#allocation3], 0
    %s9 = scalar_lea.sflag [#allocation3], 1
    %10 = vsyncpa %s9, 0
    loop: start=0, step=1, limit=4
    $region2: #{tpu_custom_call.1} parent=1 // loop_pre_header
      _
    $region3: #{tpu_custom_call.1} parent=1 // loop_header
      %s12 = sphi 0, %s16
      %p13 = scmp.ge.s32.totalorder %s12, 4
      %s19 = sphi 0, %s31
      %s20 = sphi 0, %s27
      %s21 = sphi 0, %s19
      %s22 = sphi 0, %s20
      %s23 = sphi 0, %s21
      %s24 = sphi 0, %s22
      %s34 = sphi 0, %s36
      %s37 = sphi 0, %s34
      %s38 = sphi 0, %s37
      %s54 = sphi 0, %s38
      %s60 = sphi 0, %s62
      %s63 = sphi 0, %s60
      %s64 = sphi 0, %s63
      %s80 = sphi 0, %s64
      %s86 = sphi 0, %s88
      %s89 = sphi 0, %s86
      %s90 = sphi 0, %s89
      %s106 = sphi 0, %s90
      %s114 = sphi 0, %s116
      %s117 = sphi 0, %s114
      %s118 = sphi 0, %s117
      %s134 = sphi 0, %s118
    $region4: #{tpu_custom_call.1} parent=1 // loop_header_branch
      %15 = sbr.rel (%p13) target = $region8
    $region5: #{tpu_custom_call.1} parent=1 // loop_body
      %s17 = ssub.s32 %s12, 1
      %s18 = ssub.s32 %s12, 2
      %s25 = sadd.s32 1, %s20
      %p26 = scmp.ge.s32.totalorder %s25, 1
      %s27 = scalar_select %p26, 0, %s25
      %s28 = sadd.s32 1, %s19
      %s29 = scalar_select %p26, %s28, %s19
      %p30 = scmp.ge.s32.totalorder %s29, 2
      %s31 = scalar_select %p30, 0, %s29
      %s32 = ssub.s32 %s19, %s31
      %p33 = scmp.eq.s32.totalorder %s32, 0
      %s35 = sadd.s32 %s34, 1
      %s36 = scalar_select %p33, %s34, %s35
      %p39 = pneg %p33
      %p40 = scmp.eq.s32.totalorder %s12, 1
      %p41 = por %p39, %p40
      %p42 = scmp.ne.s32.totalorder %s34, %s37
      %p43 = scmp.eq.s32.totalorder %s12, 0
      %p44 = por %p42, %p43
      %p45 = scmp.ne.s32.totalorder %s34, %s37
      %p46 = scmp.eq.s32.totalorder %s17, 1
      %p47 = por %p45, %p46
      %p48 = scmp.ne.s32.totalorder %s37, %s38
      %p49 = scmp.eq.s32.totalorder %s17, 0
      %p50 = por %p48, %p49
      %p51 = scmp.ne.s32.totalorder %s37, %s38
      %p52 = scmp.eq.s32.totalorder %s18, 1
      %p53 = por %p51, %p52
      %p55 = scmp.ne.s32.totalorder %s38, %s54
      %p56 = scmp.eq.s32.totalorder %s18, 0
      %p57 = por %p55, %p56
      %s58 = ssub.s32 %s20, %s27
      %p59 = scmp.eq.s32.totalorder %s58, 0
      %s61 = sadd.s32 %s60, 1
      %s62 = scalar_select %p59, %s60, %s61
      %p65 = pneg %p59
      %p66 = scmp.eq.s32.totalorder %s12, 1
      %p67 = por %p65, %p66
      %p68 = scmp.ne.s32.totalorder %s60, %s63
      %p69 = scmp.eq.s32.totalorder %s12, 0
      %p70 = por %p68, %p69
      %p71 = scmp.ne.s32.totalorder %s60, %s63
      %p72 = scmp.eq.s32.totalorder %s17, 1
      %p73 = por %p71, %p72
      %p74 = scmp.ne.s32.totalorder %s63, %s64
      %p75 = scmp.eq.s32.totalorder %s17, 0
      %p76 = por %p74, %p75
      %p77 = scmp.ne.s32.totalorder %s63, %s64
      %p78 = scmp.eq.s32.totalorder %s18, 1
      %p79 = por %p77, %p78
      %p81 = scmp.ne.s32.totalorder %s64, %s80
      %p82 = scmp.eq.s32.totalorder %s18, 0
      %p83 = por %p81, %p82
      %s84 = ssub.s32 %s20, %s27
      %p85 = scmp.eq.s32.totalorder %s84, 0
      %s87 = sadd.s32 %s86, 1
      %s88 = scalar_select %p85, %s86, %s87
      %p91 = pneg %p85
      %p92 = scmp.eq.s32.totalorder %s12, 1
      %p93 = por %p91, %p92
      %p94 = scmp.ne.s32.totalorder %s86, %s89
      %p95 = scmp.eq.s32.totalorder %s12, 0
      %p96 = por %p94, %p95
      %p97 = scmp.ne.s32.totalorder %s86, %s89
      %p98 = scmp.eq.s32.totalorder %s17, 1
      %p99 = por %p97, %p98
      %p100 = scmp.ne.s32.totalorder %s89, %s90
      %p101 = scmp.eq.s32.totalorder %s17, 0
      %p102 = por %p100, %p101
      %p103 = scmp.ne.s32.totalorder %s89, %s90
      %p104 = scmp.eq.s32.totalorder %s18, 1
      %p105 = por %p103, %p104
      %p107 = scmp.ne.s32.totalorder %s90, %s106
      %p108 = scmp.eq.s32.totalorder %s18, 0
      %p109 = por %p107, %p108
      %s110 = ssub.s32 %s19, %s31
      %s111 = ssub.s32 %s20, %s27
      %s112 = sor.u32 %s110, %s111
      %p113 = scmp.eq.s32.totalorder %s112, 0
      %s115 = sadd.s32 %s114, 1
      %s116 = scalar_select %p113, %s114, %s115
      %p119 = pneg %p113
      %p120 = scmp.eq.s32.totalorder %s12, 1
      %p121 = por %p119, %p120
      %p122 = scmp.ne.s32.totalorder %s114, %s117
      %p123 = scmp.eq.s32.totalorder %s12, 0
      %p124 = por %p122, %p123
      %p125 = scmp.ne.s32.totalorder %s114, %s117
      %p126 = scmp.eq.s32.totalorder %s17, 1
      %p127 = por %p125, %p126
      %p128 = scmp.ne.s32.totalorder %s117, %s118
      %p129 = scmp.eq.s32.totalorder %s17, 0
      %p130 = por %p128, %p129
      %p131 = scmp.ne.s32.totalorder %s117, %s118
      %p132 = scmp.eq.s32.totalorder %s18, 1
      %p133 = por %p131, %p132
      %p135 = scmp.ne.s32.totalorder %s118, %s134
      %p136 = scmp.eq.s32.totalorder %s18, 0
      %p137 = por %p135, %p136
      %p138 = scmp.le.s32.totalorder 1, %s12
      %p139 = scmp.lt.s32.totalorder %s12, 3
      %p140 = pnand %p138, %p139
      %p141 = pneg %p140
      // Predicated region
      $region9: #{tpu_custom_call.1} parent=5 // pred_check
        _
      $region10: #{tpu_custom_call.1} parent=5 // pred_check_branch
        %143 = sbr.rel (%p140) target = $region12
      $region11: #{tpu_custom_call.1} parent=5 // pred_region
        %s144 = ssub.s32 %s12, 1
        // Predicated region
        $region13: #{tpu_custom_call.1} parent=11 // pred_check
          %p145 = pneg %p76
        $region14: #{tpu_custom_call.1} parent=11 // pred_check_branch
          %147 = sbr.rel (%p145) target = $region16
        $region15: #{tpu_custom_call.1} parent=11 // pred_region
          %p148 = scmp.lt.s32.totalorder %s22, 0
          %s149 = scalar_select %p148, %s22, 0
          %s150 = smul.addr %s149, 4
          %s151 = scalar_lea.vmem %s1, %s150
        $region16: #{tpu_custom_call.1} parent=11 // pred_fallthru
          _
        // Predicated region
        $region17: #{tpu_custom_call.1} parent=11 // pred_check
          %p152 = pneg %p102
        $region18: #{tpu_custom_call.1} parent=11 // pred_check_branch
          %154 = sbr.rel (%p152) target = $region20
        $region19: #{tpu_custom_call.1} parent=11 // pred_region
          %p155 = scmp.lt.s32.totalorder %s22, 0
          %s156 = scalar_select %p155, %s22, 0
          %s157 = scalar_lea.vmem %s2, %s156
        $region20: #{tpu_custom_call.1} parent=11 // pred_fallthru
          _
      $region12: #{tpu_custom_call.1} parent=5 // pred_fallthru
        _
      %p158 = scmp.lt.s32.totalorder %s12, 2
      // Predicated region
      $region21: #{tpu_custom_call.1} parent=5 // pred_check
        %p159 = pneg %p158
      $region22: #{tpu_custom_call.1} parent=5 // pred_check_branch
        %161 = sbr.rel (%p159) target = $region24
      $region23: #{tpu_custom_call.1} parent=5 // pred_region
        // Predicated region
        $region25: #{tpu_custom_call.1} parent=23 // pred_check
          %p162 = pneg %p44
        $region26: #{tpu_custom_call.1} parent=23 // pred_check_branch
          %164 = sbr.rel (%p162) target = $region28
        $region27: #{tpu_custom_call.1} parent=23 // pred_region
          %s165 = smul.u32 8, %s19
          %p166 = scmp.lt.s32.totalorder %s165, 15
          %s167 = scalar_select %p166, %s165, 15
          %s168 = smul.addr %s167, 4
          %s169 = scalar_lea.vmem %s0, %s168
          %s170 = smul.u32 8, %s19
        $region28: #{tpu_custom_call.1} parent=23 // pred_fallthru
          _
      $region24: #{tpu_custom_call.1} parent=5 // pred_fallthru
        _
      %p171 = scmp.le.s32.totalorder 1, %s12
      %p172 = scmp.lt.s32.totalorder %s12, 3
      %p173 = pnand %p171, %p172
      %p174 = pneg %p173
      // Predicated region
      $region29: #{tpu_custom_call.1} parent=5 // pred_check
        _
      $region30: #{tpu_custom_call.1} parent=5 // pred_check_branch
        %176 = sbr.rel (%p173) target = $region32
      $region31: #{tpu_custom_call.1} parent=5 // pred_region
        %s177 = ssub.s32 %s12, 1
        %s178 = smul.u32 8, %s21
        %p179 = scmp.lt.s32.totalorder %s178, 15
        %s180 = scalar_select %p179, %s178, 15
        %s181 = smul.addr %s180, 4
        %s182 = scalar_lea.vmem %s0, %s181
        %p183 = pneg %p50
        %p184 = pneg %p47
        %p185 = scmp.lt.s32.totalorder %s22, 0
        %s186 = scalar_select %p185, %s22, 0
        %s187 = smul.addr %s186, 4
        %s188 = scalar_lea.vmem %s1, %s187
        %p189 = pneg %p76
        %p190 = pneg %p73
        %p191 = scmp.lt.s32.totalorder %s22, 0
        %s192 = scalar_select %p191, %s22, 0
        %s193 = scalar_lea.vmem %s2, %s192
        %p194 = pneg %p102
        %p195 = pneg %p99
        %p196 = pneg %p130
        %p197 = pneg %p127
        %s198 = sand.u32 %s117, 1
        %s199 = scalar_lea.sflag [#allocation3], %s198
        %s200 = sand.u32 %s117, 1
        %s201 = smul.addr %s200, 32
        %s202 = scalar_lea.vmem [#allocation2], %s201
        %s203 = smul.u32 8, %s21
        %p204 = scmp.lt.s32.totalorder %s203, 15
        %s205 = scalar_select %p204, %s203, 15
        %s206 = smul.addr %s205, 4
        %s207 = scalar_lea.vmem %s0, %s206
        %s208 = smul.u32 8, %s21
        %p209 = scmp.lt.s32.totalorder %s22, 0
        %s210 = scalar_select %p209, %s22, 0
        %s211 = smul.addr %s210, 4
        %s212 = scalar_lea.vmem %s1, %s211
        %p213 = scmp.lt.s32.totalorder %s22, 0
        %s214 = scalar_select %p213, %s22, 0
        %s215 = scalar_lea.vmem %s2, %s214
        %s216 = smul.u32 8, %s21
        %v218 = vld [vmem:[%s207] sm:$0xf]
        %v219 = vld [vmem:[%s207 + $0x4] sm:$0xf]
        %v220 = vld [vmem:[%s207 + $0x8] sm:$0xf]
        %v221 = vld [vmem:[%s207 + $0xc] sm:$0xf]
        %v222 = vld [vmem:[%s207 + $0x10] sm:$0xf]
        %v223 = vld [vmem:[%s207 + $0x14] sm:$0xf]
        %v224 = vld [vmem:[%s207 + $0x18] sm:$0xf]
        %v225 = vld [vmem:[%s207 + $0x1c] sm:$0xf]
        %v226 = vld [vmem:[%s212] sm:$0xf]
        %v227 = vld [vmem:[%s212 + $0x4] sm:$0xf]
        %v228 = vld [vmem:[%s212 + $0x8] sm:$0xf]
        %v229 = vld [vmem:[%s212 + $0xc] sm:$0xf]
        %v230 = vld [vmem:[%s215] sm:$0x1]
        %v232 = vperm.slane %v230, 0
        %v242 = vunpack.c.l.b16 %v218
        %v243 = vunpack.c.l.b16 %v219
        %v244 = vunpack.c.l.b16 %v220
        %v245 = vunpack.c.l.b16 %v221
        %v246 = vunpack.c.l.b16 %v222
        %v247 = vunpack.c.l.b16 %v223
        %v248 = vunpack.c.l.b16 %v224
        %v249 = vunpack.c.l.b16 %v225
        %v250 = vpack.c.b16 %v243, %v242
        %v251 = vpack.c.b16 %v245, %v244
        %v252 = vpack.c.b16 %v247, %v246
        %v253 = vpack.c.b16 %v249, %v248
        %v258 = vunpack.c.l.b16 %v226
        %v259 = vunpack.c.l.b16 %v227
        %v260 = vunpack.c.l.b16 %v228
        %v261 = vunpack.c.l.b16 %v229
        %v262 = vpack.c.b16 %v259, %v258
        %v263 = vpack.c.b16 %v261, %v260
        %vm266 = vcmask 261120
        %v268 = vsel %vm266, %v250, 0
        %v271 = vsel %vm266, %v251, 0
        %v274 = vsel %vm266, %v252, 0
        %v277 = vsel %vm266, %v253, 0
        %279 = vmatpush.bf16.msra.mxu0 0
        %280 = vmatpush.bf16.msra.mxu0 0
        %281 = vmatpush.bf16.msra.mxu0 0
        %282 = vmatpush.bf16.msra.mxu0 0
        %283 = vmatpush.bf16.msra.mxu0 0
        %284 = vmatpush.bf16.msra.mxu0 0
        %285 = vmatpush.bf16.msra.mxu0 %v263
        %286 = vmatpush.bf16.msra.mxu0 %v262
        %287 = vmatmul.bf16.gmra.mxu0 %v268
        %v288 = vpop.f32.mrf.mxu0
        %v289 = vadd.f32 %v232, %v288
        %v290 = vpop.f32.mrf.mxu0
        %v291 = vadd.f32 %v232, %v290
        %292 = vmatmul.bf16.gmra.mxu0 %v271
        %v293 = vpop.f32.mrf.mxu0
        %v294 = vadd.f32 %v232, %v293
        %v295 = vpop.f32.mrf.mxu0
        %v296 = vadd.f32 %v232, %v295
        %297 = vmatmul.bf16.gmra.mxu0 %v274
        %v298 = vpop.f32.mrf.mxu0
        %v299 = vadd.f32 %v232, %v298
        %v300 = vpop.f32.mrf.mxu0
        %v301 = vadd.f32 %v232, %v300
        %302 = vmatmul.bf16.gmra.mxu0 %v277
        %v303 = vpop.f32.mrf.mxu0
        %v304 = vadd.f32 %v232, %v303
        %v305 = vpop.f32.mrf.mxu0
        %v306 = vadd.f32 %v232, %v305
        %307 = vdwg.mxu0
        %v308 = vmax.f32 %v289, 0.0
        %v309 = vmax.f32 %v291, 0.0
        %v310 = vmax.f32 %v294, 0.0
        %v311 = vmax.f32 %v296, 0.0
        %v312 = vmax.f32 %v299, 0.0
        %v313 = vmax.f32 %v301, 0.0
        %v314 = vmax.f32 %v304, 0.0
        %v315 = vmax.f32 %v306, 0.0
        %v316 = vpack.c.bf16 %v308, %v308
        %v317 = vpack.c.bf16 %v309, %v309
        %v318 = vpack.c.bf16 %v310, %v310
        %v319 = vpack.c.bf16 %v311, %v311
        %v320 = vpack.c.bf16 %v312, %v312
        %v321 = vpack.c.bf16 %v313, %v313
        %v322 = vpack.c.bf16 %v314, %v314
        %v323 = vpack.c.bf16 %v315, %v315
        %324 = vst [vmem:[%s202] sm:$0xf] %v316
        %325 = vst [vmem:[%s202 + $0x4] sm:$0xf] %v317
        %326 = vst [vmem:[%s202 + $0x8] sm:$0xf] %v318
        %327 = vst [vmem:[%s202 + $0xc] sm:$0xf] %v319
        %328 = vst [vmem:[%s202 + $0x10] sm:$0xf] %v320
        %329 = vst [vmem:[%s202 + $0x14] sm:$0xf] %v321
        %330 = vst [vmem:[%s202 + $0x18] sm:$0xf] %v322
        %331 = vst [vmem:[%s202 + $0x1c] sm:$0xf] %v323
        %s332 = sand.u32 %s117, 1
        %s333 = scalar_lea.sflag [#allocation3], %s332
        %s334 = sand.u32 %s117, 1
        %s335 = smul.addr %s334, 32
        %s336 = scalar_lea.vmem [#allocation2], %s335
        // Predicated region
        $region33: #{tpu_custom_call.1} parent=31 // pred_check
          %p337 = pneg %p127
        $region34: #{tpu_custom_call.1} parent=31 // pred_check_branch
          %339 = sbr.rel (%p337) target = $region36
        $region35: #{tpu_custom_call.1} parent=31 // pred_region
          %s340 = smul.u32 8, %s21
          %342 = vsyncadd %s333, 0
          %s343 = sadd.s32 %s22, %s340
          %s344 = smul.addr %s343, 4
          %s345 = scalar_lea.hbm %s3, %s344
          %s346 = sshll.u32 %s336, 4
          %s347 = int_to_ptr.vmem [resolvable:$true] %s346
          %s348 = sshll.u32 %s345, 4
          %s349 = int_to_ptr.hbm [resolvable:$true] %s348
          %354 = dma.vmem_to_hbm [thread:$0]  %s347, 512, %s349, %s333, 64, 64, 4
        $region36: #{tpu_custom_call.1} parent=31 // pred_fallthru
          _
      $region32: #{tpu_custom_call.1} parent=5 // pred_fallthru
        _
      %p355 = scmp.le.s32.totalorder 2, %s12
      // Predicated region
      $region37: #{tpu_custom_call.1} parent=5 // pred_check
        %p356 = pneg %p355
      $region38: #{tpu_custom_call.1} parent=5 // pred_check_branch
        %358 = sbr.rel (%p356) target = $region40
      $region39: #{tpu_custom_call.1} parent=5 // pred_region
        %s359 = ssub.s32 %s12, 2
        // Predicated region
        $region41: #{tpu_custom_call.1} parent=39 // pred_check
          %p360 = pneg %p133
        $region42: #{tpu_custom_call.1} parent=39 // pred_check_branch
          %362 = sbr.rel (%p360) target = $region44
        $region43: #{tpu_custom_call.1} parent=39 // pred_region
          %s363 = sand.u32 %s118, 1
          %s364 = scalar_lea.sflag [#allocation3], %s363
          %s365 = sand.u32 %s118, 1
          %s366 = smul.addr %s365, 32
          %s367 = scalar_lea.vmem [#allocation2], %s366
          %369 = dma.done %s364, 512
        $region44: #{tpu_custom_call.1} parent=39 // pred_fallthru
          _
      $region40: #{tpu_custom_call.1} parent=5 // pred_fallthru
        _
    $region6: #{tpu_custom_call.1} parent=1 // loop_footer
      %s16 = sadd.s32 1, %s12
    $region7: #{tpu_custom_call.1} parent=1 // loop_footer_branch
      %11 = sbr.rel target = $region3
    $region8: #{tpu_custom_call.1} parent=1 // loop_exit
      _
    %370 = vsyncpa [#allocation3], 1
    %s371 = scalar_lea.sflag [#allocation3], 1
    %372 = vsyncpa %s371, 1

</llo_original>
